<compile_context>
chip_gen: v6e
topology: v6e:2x2x1
jax: 0.10.0
libtpu: 0.0.40
codegen_flags: <defaults>
</compile_context>

<pallas_src>
import math

import jax
import jax.numpy as jnp
from jax.experimental import pallas as pl
from jax.experimental.pallas import tpu as pltpu


# ---------------------------------------------------------------------------
# Kernels
# ---------------------------------------------------------------------------
def _cell_step_kernel(x_ref, h_ref, w_ref, b_ref, o_ref):
    """One cell step: relu(x @ Wi^T + hx @ Wh^T + b), f32 accumulate/epilogue."""
    ind = x_ref.shape[-1]
    outd = h_ref.shape[-1]
    wdt = w_ref.dtype
    acc = jnp.dot(x_ref[...].astype(wdt), w_ref[pl.ds(0, ind), :],
                  preferred_element_type=jnp.float32)
    acc = acc + jnp.dot(h_ref[...].astype(wdt), w_ref[pl.ds(ind, outd), :],
                        preferred_element_type=jnp.float32)
    o_ref[...] = jnp.maximum(acc + b_ref[...].astype(jnp.float32),
                             0.0).astype(o_ref.dtype)


def _cell_seq_kernel(x_ref, h0_ref, w_ref, b_ref, hs_ref, h_c):
    """Fused T-step recurrence; hx carried across grid steps in VMEM scratch."""
    t = pl.program_id(0)

    @pl.when(t == 0)
    def _():
        h_c[...] = h0_ref[...].astype(jnp.float32)

    ind = x_ref.shape[-1]
    outd = h_c.shape[-1]
    wdt = w_ref.dtype
    acc = jnp.dot(x_ref[0].astype(wdt), w_ref[pl.ds(0, ind), :],
                  preferred_element_type=jnp.float32)
    acc = acc + jnp.dot(h_c[...].astype(wdt), w_ref[pl.ds(ind, outd), :],
                        preferred_element_type=jnp.float32)
    h_new = jnp.maximum(acc + b_ref[...].astype(jnp.float32), 0.0)
    h_c[...] = h_new
    hs_ref[0] = h_new.astype(hs_ref.dtype)


# ---------------------------------------------------------------------------
# Wrappers
# ---------------------------------------------------------------------------
def plastic_rnn_cell(x, hx, w_cat, bias):
    """Single PlasticRNNCell step (matches the module's forward).

    x:     (B, ind)
    hx:    (B, outd)
    w_cat: (ind + outd, outd)  == [Wi^T ; Wh^T] stacked once at init
    bias:  (1, outd) f32       == bi + bh
    Returns (B, outd) in x.dtype.
    """
    B, ind = x.shape
    outd = hx.shape[1]
    assert hx.shape == (B, outd)
    assert w_cat.shape == (ind + outd, outd)
    assert bias.shape == (1, outd)

    vmem = pl.BlockSpec(memory_space=pltpu.MemorySpace.VMEM)
    flops = 2 * B * (ind + outd) * outd
    bytes_accessed = (x.size * x.dtype.itemsize + hx.size * hx.dtype.itemsize
                      + w_cat.size * w_cat.dtype.itemsize
                      + bias.size * bias.dtype.itemsize
                      + B * outd * x.dtype.itemsize)
    # NOTE: when this is driven step-by-step from outside, prefer
    # plastic_rnn_sequence (launch amortized) or alias hx->out with
    # input_output_aliases; kept un-aliased here so hx stays live for checks.
    return pl.pallas_call(
        _cell_step_kernel,
        out_shape=jax.ShapeDtypeStruct((B, outd), x.dtype),
        in_specs=[vmem, vmem, vmem, vmem],
        out_specs=vmem,
        cost_estimate=pl.CostEstimate(flops=flops,
                                      bytes_accessed=bytes_accessed,
                                      transcendentals=0),
    )(x, hx, w_cat, bias)


def plastic_rnn_sequence(xs, h0, w_cat, bias):
    """Run the cell over a whole sequence inside one pallas_call.

    xs:    (T, B, ind)   inputs per step
    h0:    (B, outd)     initial hidden
    w_cat: (ind + outd, outd)
    bias:  (1, outd) f32
    Returns all hidden states (T, B, outd); final hx is result[-1].
    """
    T, B, ind = xs.shape
    outd = h0.shape[1]
    assert h0.shape == (B, outd)
    assert w_cat.shape == (ind + outd, outd)
    assert bias.shape == (1, outd)

    grid_spec = pltpu.PrefetchScalarGridSpec(
        num_scalar_prefetch=0,
        grid=(T,),
        in_specs=[
            pl.BlockSpec((1, B, ind), lambda t: (t, 0, 0)),        # x_t streamed
            pl.BlockSpec((B, outd), lambda t: (0, 0)),             # h0 resident
            pl.BlockSpec((ind + outd, outd), lambda t: (0, 0)),    # weights resident
            pl.BlockSpec((1, outd), lambda t: (0, 0)),             # bias resident
        ],
        out_specs=pl.BlockSpec((1, B, outd), lambda t: (t, 0, 0)),
        scratch_shapes=[pltpu.VMEM((B, outd), jnp.float32)],       # hx carry
    )
    flops = 2 * T * B * (ind + outd) * outd
    bytes_accessed = (xs.size * xs.dtype.itemsize + h0.size * h0.dtype.itemsize
                      + w_cat.size * w_cat.dtype.itemsize
                      + bias.size * bias.dtype.itemsize
                      + T * B * outd * xs.dtype.itemsize)
    return pl.pallas_call(
        _cell_seq_kernel,
        out_shape=jax.ShapeDtypeStruct((T, B, outd), xs.dtype),
        grid_spec=grid_spec,
        compiler_params=pltpu.CompilerParams(
            dimension_semantics=("arbitrary",)),                   # carried hx
        cost_estimate=pl.CostEstimate(flops=flops,
                                      bytes_accessed=bytes_accessed,
                                      transcendentals=0),
    )(xs, h0, w_cat, bias)


# ---------------------------------------------------------------------------
# Params / references
# ---------------------------------------------------------------------------
def init_params(key, ind, outd, scale=1.0, param_dtype=jnp.float32):
    """PlasticLinear-style kaiming-uniform-like init.

    Weights are stored pre-transposed and stacked ONCE as [Wi^T ; Wh^T] ->
    (ind+outd, outd) in `param_dtype` (use jnp.bfloat16 on v6e/v7x to halve
    the dominant weight DMA; accumulation stays f32).  Bias stays f32 for the
    f32 epilogue.
    """
    k_wi, k_wh, k_bi, k_bh = jax.random.split(key, 4)
    bound_i = 1.0 / math.sqrt(ind)
    bound_h = 1.0 / math.sqrt(outd)
    wi_t = jax.random.uniform(k_wi, (ind, outd), jnp.float32, -bound_i, bound_i) * scale
    wh_t = jax.random.uniform(k_wh, (outd, outd), jnp.float32, -bound_h, bound_h) * scale
    bi = jax.random.uniform(k_bi, (outd,), jnp.float32, -bound_i, bound_i) * scale
    bh = jax.random.uniform(k_bh, (outd,), jnp.float32, -bound_h, bound_h) * scale
    w_cat = jnp.concatenate([wi_t, wh_t], axis=0).astype(param_dtype)  # once, at init
    bias = (bi + bh).reshape(1, outd)                                  # f32
    return w_cat, bias


def reference_step(x, hx, w_cat, bias):
    ind = x.shape[1]
    w = w_cat.astype(jnp.float32)
    return jnp.maximum(x @ w[:ind] + hx @ w[ind:] + bias, 0.0)


def reference_seq(xs, h0, w_cat, bias):
    ind = xs.shape[-1]
    w = w_cat.astype(jnp.float32)
    wi_t, wh_t = w[:ind], w[ind:]

    def step(h, x):
        h_new = jnp.maximum(x @ wi_t + h @ wh_t + bias, 0.0)
        return h_new, h_new

    _, hs = jax.lax.scan(step, h0, xs)
    return hs


# ---------------------------------------------------------------------------
if __name__ == "__main__":
    B, ind, outd, T = 8, 64, 128, 8

    key = jax.random.PRNGKey(0)
    k_x, k_xs, k_h, k_p = jax.random.split(key, 4)
    x = jax.random.normal(k_x, (B, ind), jnp.float32)
    xs = jax.random.normal(k_xs, (T, B, ind), jnp.float32)
    h0 = jax.random.normal(k_h, (B, outd), jnp.float32)
    w_cat, bias = init_params(k_p, ind, outd, scale=1.0)

    # --- single step (the module's forward), f32 params ---
    out = jax.block_until_ready(plastic_rnn_cell(x, h0, w_cat, bias))
    ref = reference_step(x, h0, w_cat, bias)
    assert out.shape == (B, outd)
    assert jnp.allclose(out, ref, atol=1e-4, rtol=1e-4)

    # --- fused T-step recurrence in one pallas_call ---
    hs = jax.block_until_ready(plastic_rnn_sequence(xs, h0, w_cat, bias))
    hs_ref = reference_seq(xs, h0, w_cat, bias)
    assert hs.shape == (T, B, outd)
    assert jnp.allclose(hs, hs_ref, atol=1e-3, rtol=1e-3)

    # --- bf16-stored weights (v6e/v7x-friendly), f32 accumulate/epilogue ---
    w_bf, bias_bf = init_params(k_p, ind, outd, scale=1.0, param_dtype=jnp.bfloat16)
    hs_bf = jax.block_until_ready(plastic_rnn_sequence(xs, h0, w_bf, bias_bf))
    hs_bf_ref = reference_seq(xs, h0, w_bf, bias_bf)
    assert jnp.allclose(hs_bf, hs_bf_ref, atol=3e-2, rtol=3e-2)

    print("KERNEL_OK")
</pallas_src>

<mosaic_0001>
module attributes {stable_mosaic.version = 11 : i64} {
  func.func @_cell_step_kernel(%arg0: memref<8x64xf32, #tpu.memory_space<vmem>>, %arg1: memref<8x128xf32, #tpu.memory_space<vmem>>, %arg2: memref<192x128xf32, #tpu.memory_space<vmem>>, %arg3: memref<1x128xf32, #tpu.memory_space<vmem>>, %arg4: memref<8x128xf32, #tpu.memory_space<vmem>>) attributes {dimension_semantics = [], scalar_prefetch = 0 : i64, scratch_operands = 0 : i64, tpu.core_type = #tpu.core_type<tc>} {
    %c0 = arith.constant 0 : index
    %c0_0 = arith.constant 0 : index
    %0 = vector.load %arg0[%c0, %c0_0] : memref<8x64xf32, #tpu.memory_space<vmem>>, vector<8x64xf32>
    %c0_1 = arith.constant 0 : index
    %c0_2 = arith.constant 0 : index
    %1 = vector.load %arg2[%c0_1, %c0_2] : memref<192x128xf32, #tpu.memory_space<vmem>>, vector<64x128xf32>
    %cst = arith.constant dense<0.000000e+00> : vector<8x128xf32>
    %2 = tpu.matmul %0, %1, %cst {dimension_numbers = #tpu.dot_dimension_numbers<[1], [0], [0], [1], [0, 0, 1, 1], [], []>} : vector<8x64xf32>, vector<64x128xf32>, vector<8x128xf32> -> vector<8x128xf32>
    %c0_3 = arith.constant 0 : index
    %c0_4 = arith.constant 0 : index
    %3 = vector.load %arg1[%c0_3, %c0_4] : memref<8x128xf32, #tpu.memory_space<vmem>>, vector<8x128xf32>
    %c64 = arith.constant 64 : index
    %c0_5 = arith.constant 0 : index
    %4 = vector.load %arg2[%c64, %c0_5] : memref<192x128xf32, #tpu.memory_space<vmem>>, vector<128x128xf32>
    %cst_6 = arith.constant dense<0.000000e+00> : vector<8x128xf32>
    %5 = tpu.matmul %3, %4, %cst_6 {dimension_numbers = #tpu.dot_dimension_numbers<[1], [0], [0], [1], [0, 0, 1, 1], [], []>} : vector<8x128xf32>, vector<128x128xf32>, vector<8x128xf32> -> vector<8x128xf32>
    %6 = arith.addf %2, %5 : vector<8x128xf32>
    %c0_7 = arith.constant 0 : index
    %c0_8 = arith.constant 0 : index
    %7 = vector.load %arg3[%c0_7, %c0_8] : memref<1x128xf32, #tpu.memory_space<vmem>>, vector<1x128xf32>
    %8 = vector.broadcast %7 : vector<1x128xf32> to vector<8x128xf32>
    %9 = arith.addf %6, %8 : vector<8x128xf32>
    %cst_9 = arith.constant 0.000000e+00 : f32
    %10 = vector.broadcast %cst_9 : f32 to vector<8x128xf32>
    %11 = arith.maximumf %9, %10 : vector<8x128xf32>
    %c0_10 = arith.constant 0 : index
    %c0_11 = arith.constant 0 : index
    %12 = vector.load %arg4[%c0_10, %c0_11] : memref<8x128xf32, #tpu.memory_space<vmem>>, vector<8x128xf32>
    tpu.vector_store %arg4[%c0_10, %c0_11], %11 {strides = array<i32>} : memref<8x128xf32, #tpu.memory_space<vmem>>, vector<8x128xf32>,
    return
  }
}

</mosaic_0001>

<llo_original>
// kernel: tpu_custom_call.1
$region0: #{tpu_custom_call.1}
  #allocation0 [shape = 'u32[]', space=smem, size = 0x4, offset = 0x4, fixed_abs, tag = 'smem constant byte address 0x4 - core index']
  #allocation1 [shape = 'u32[144,128]{1,0:T(1,128)}', space=vmem, size = 0x12000, scoped, tag = 'internal scratch']
  %s0 = inlined_call_operand.hbm [shape: f32[8,64], index: 0, kind: input, shape index: {}]
  %s1 = inlined_call_operand.hbm [shape: f32[8,128], index: 1, kind: input, shape index: {}]
  %s2 = inlined_call_operand.hbm [shape: f32[192,128], index: 2, kind: input, shape index: {}]
  %s3 = inlined_call_operand.vmem [shape: f32[1,128], index: 3, kind: input, shape index: {}]
  %s4 = inlined_call_operand.hbm [shape: f32[8,128], index: 4, kind: output, shape index: {}]
  %s5 = sld [smem:[#allocation0]]
  $region38: #{tpu_custom_call.1} parent=0
    _
  %s7 = ssub.s32 1, %s5
  %s8 = scalar_select 0, %s7, %s5
  $region1: #{tpu_custom_call.1} parent=0
    #allocation2 [shape = 'u8[4096]{0}', space=vmem, size = 0x1000, scoped, tag = 'input window, operand 0, single buffered']
    #allocation3 [shape = 's32[1]{0}', space=sflag, size = 0x4, scoped, tag = 'scoped memory for tpu_custom_call.1']
    #allocation4 [shape = 's32[1]{0}', space=sflag, size = 0x4, scoped, tag = 'scoped memory for tpu_custom_call.1']
    #allocation5 [shape = 'u8[4096]{0}', space=vmem, size = 0x1000, scoped, tag = 'input window, operand 1, single buffered']
    #allocation6 [shape = 's32[1]{0}', space=sflag, size = 0x4, scoped, tag = 'scoped memory for tpu_custom_call.1']
    #allocation7 [shape = 'u8[98304]{0}', space=vmem, size = 0x18000, scoped, tag = 'input window, operand 2, single buffered']
    #allocation8 [shape = 'u8[4096]{0}', space=vmem, size = 0x1000, scoped, tag = 'output window, operand 0, single buffered']
    %9 = vsyncpa [#allocation3], 0
    %10 = vsyncpa [#allocation6], 0
    %11 = vsyncpa [#allocation4], 0
    // Predicated region
    $region2: #{tpu_custom_call.1} parent=1 // pred_check
      _
    $region3: #{tpu_custom_call.1} parent=1 // pred_check_branch
      %13 = sbr.rel (0) target = $region5
    $region4: #{tpu_custom_call.1} parent=1 // pred_region
      %s15 = ssub.s32 128, 128
      %16 = vsyncadd [#allocation3], %s15
      %s18 = sshll.u32 [#allocation2], 4
      %s19 = int_to_ptr.vmem [resolvable:$true] %s18
      %21 = dma.hbm_to_vmem [thread:$0]  %s0, 128, %s19, [#allocation3]
    $region5: #{tpu_custom_call.1} parent=1 // pred_fallthru
      _
    // Predicated region
    $region6: #{tpu_custom_call.1} parent=1 // pred_check
      _
    $region7: #{tpu_custom_call.1} parent=1 // pred_check_branch
      %23 = sbr.rel (0) target = $region9
    $region8: #{tpu_custom_call.1} parent=1 // pred_region
      %s25 = ssub.s32 128, 128
      %26 = vsyncadd [#allocation6], %s25
      %s28 = sshll.u32 [#allocation5], 4
      %s29 = int_to_ptr.vmem [resolvable:$true] %s28
      %31 = dma.hbm_to_vmem [thread:$0]  %s1, 128, %s29, [#allocation6]
    $region9: #{tpu_custom_call.1} parent=1 // pred_fallthru
      _
    // Predicated region
    $region10: #{tpu_custom_call.1} parent=1 // pred_check
      _
    $region11: #{tpu_custom_call.1} parent=1 // pred_check_branch
      %33 = sbr.rel (0) target = $region13
    $region12: #{tpu_custom_call.1} parent=1 // pred_region
      %s35 = ssub.s32 3072, 3072
      %36 = vsyncadd [#allocation6], %s35
      %s37 = sshll.u32 [#allocation7], 4
      %s38 = int_to_ptr.vmem [resolvable:$true] %s37
      %43 = dma.hbm_to_vmem [thread:$0]  %s2, 3072, %s38, [#allocation6], 128, 128, 8
    $region13: #{tpu_custom_call.1} parent=1 // pred_fallthru
      _
    // Predicated region
    $region14: #{tpu_custom_call.1} parent=1 // pred_check
      _
    $region15: #{tpu_custom_call.1} parent=1 // pred_check_branch
      %45 = sbr.rel (0) target = $region17
    $region16: #{tpu_custom_call.1} parent=1 // pred_region
      _
    $region17: #{tpu_custom_call.1} parent=1 // pred_fallthru
      _
    // Predicated region
    $region18: #{tpu_custom_call.1} parent=1 // pred_check
      _
    $region19: #{tpu_custom_call.1} parent=1 // pred_check_branch
      %47 = sbr.rel (0) target = $region21
    $region20: #{tpu_custom_call.1} parent=1 // pred_region
      %48 = dma.done [#allocation3], 128
    $region21: #{tpu_custom_call.1} parent=1 // pred_fallthru
      _
    // Predicated region
    $region22: #{tpu_custom_call.1} parent=1 // pred_check
      _
    $region23: #{tpu_custom_call.1} parent=1 // pred_check_branch
      %50 = sbr.rel (0) target = $region25
    $region24: #{tpu_custom_call.1} parent=1 // pred_region
      %51 = dma.done [#allocation6], 128
    $region25: #{tpu_custom_call.1} parent=1 // pred_fallthru
      _
    // Predicated region
    $region26: #{tpu_custom_call.1} parent=1 // pred_check
      _
    $region27: #{tpu_custom_call.1} parent=1 // pred_check_branch
      %53 = sbr.rel (0) target = $region29
    $region28: #{tpu_custom_call.1} parent=1 // pred_region
      %54 = dma.done [#allocation6], 3072
    $region29: #{tpu_custom_call.1} parent=1 // pred_fallthru
      _
    %v55 = vld [vmem:[#allocation2] sm:$0xff]
    %v56 = vld [vmem:[#allocation7] sm:$0xff]
    %v57 = vld [vmem:[#allocation7 + $0x8] sm:$0xff]
    %v58 = vld [vmem:[#allocation7 + $0x10] sm:$0xff]
    %v59 = vld [vmem:[#allocation7 + $0x18] sm:$0xff]
    %v60 = vld [vmem:[#allocation7 + $0x20] sm:$0xff]
    %v61 = vld [vmem:[#allocation7 + $0x28] sm:$0xff]
    %v62 = vld [vmem:[#allocation7 + $0x30] sm:$0xff]
    %v63 = vld [vmem:[#allocation7 + $0x38] sm:$0xff]
    %v64 = vld [vmem:[#allocation5] sm:$0xff]
    %v65 = vld [vmem:[#allocation7 + $0x40] sm:$0xff]
    %v66 = vld [vmem:[#allocation7 + $0x48] sm:$0xff]
    %v67 = vld [vmem:[#allocation7 + $0x50] sm:$0xff]
    %v68 = vld [vmem:[#allocation7 + $0x58] sm:$0xff]
    %v69 = vld [vmem:[#allocation7 + $0x60] sm:$0xff]
    %v70 = vld [vmem:[#allocation7 + $0x68] sm:$0xff]
    %v71 = vld [vmem:[#allocation7 + $0x70] sm:$0xff]
    %v72 = vld [vmem:[#allocation7 + $0x78] sm:$0xff]
    %v73 = vld [vmem:[#allocation7 + $0x80] sm:$0xff]
    %v74 = vld [vmem:[#allocation7 + $0x88] sm:$0xff]
    %v75 = vld [vmem:[#allocation7 + $0x90] sm:$0xff]
    %v76 = vld [vmem:[#allocation7 + $0x98] sm:$0xff]
    %v77 = vld [vmem:[#allocation7 + $0xa0] sm:$0xff]
    %v78 = vld [vmem:[#allocation7 + $0xa8] sm:$0xff]
    %v79 = vld [vmem:[#allocation7 + $0xb0] sm:$0xff]
    %v80 = vld [vmem:[#allocation7 + $0xb8] sm:$0xff]
    %81 = vmatprep.subr.mxu0 0.0
    %82 = vmatpush1.msra.mxu0 %v80
    %83 = vmatprep.subr.mxu0 0.0
    %84 = vmatpush1.msra.mxu0 %v79
    %85 = vmatprep.subr.mxu0 0.0
    %86 = vmatpush1.msra.mxu0 %v78
    %87 = vmatprep.subr.mxu0 0.0
    %88 = vmatpush1.msra.mxu0 %v77
    %89 = vmatprep.subr.mxu0 0.0
    %90 = vmatpush1.msra.mxu0 %v76
    %91 = vmatprep.subr.mxu0 0.0
    %92 = vmatpush1.msra.mxu0 %v75
    %93 = vmatprep.subr.mxu0 0.0
    %94 = vmatpush1.msra.mxu0 %v74
    %95 = vmatprep.subr.mxu0 0.0
    %96 = vmatpush1.msra.mxu0 %v73
    %97 = vmatprep.subr.mxu0 0.0
    %98 = vmatpush1.msra.mxu0 %v72
    %99 = vmatprep.subr.mxu0 0.0
    %100 = vmatpush1.msra.mxu0 %v71
    %101 = vmatprep.subr.mxu0 0.0
    %102 = vmatpush1.msra.mxu0 %v70
    %103 = vmatprep.subr.mxu0 0.0
    %104 = vmatpush1.msra.mxu0 %v69
    %105 = vmatprep.subr.mxu0 0.0
    %106 = vmatpush1.msra.mxu0 %v68
    %107 = vmatprep.subr.mxu0 0.0
    %108 = vmatpush1.msra.mxu0 %v67
    %109 = vmatprep.subr.mxu0 0.0
    %110 = vmatpush1.msra.mxu0 %v66
    %111 = vmatprep.subr.mxu0 0.0
    %112 = vmatpush1.msra.mxu0 %v65
    %113 = vmatprep.subr.mxu0 0.0
    %114 = vmatpush2.msra.mxu0 0.0
    %115 = vmatprep.subr.mxu0 0.0
    %116 = vmatpush2.msra.mxu0 0.0
    %117 = vmatprep.subr.mxu0 0.0
    %118 = vmatpush2.msra.mxu0 0.0
    %119 = vmatprep.subr.mxu0 0.0
    %120 = vmatpush2.msra.mxu0 0.0
    %121 = vmatprep.subr.mxu0 0.0
    %122 = vmatpush2.msra.mxu0 0.0
    %123 = vmatprep.subr.mxu0 0.0
    %124 = vmatpush2.msra.mxu0 0.0
    %125 = vmatprep.subr.mxu0 0.0
    %126 = vmatpush2.msra.mxu0 0.0
    %127 = vmatprep.subr.mxu0 0.0
    %128 = vmatpush2.msra.mxu0 0.0
    %129 = vmatprep.subr.mxu0 0.0
    %130 = vmatpush2.msra.mxu0 0.0
    %131 = vmatprep.subr.mxu0 0.0
    %132 = vmatpush2.msra.mxu0 0.0
    %133 = vmatprep.subr.mxu0 0.0
    %134 = vmatpush2.msra.mxu0 0.0
    %135 = vmatprep.subr.mxu0 0.0
    %136 = vmatpush2.msra.mxu0 0.0
    %137 = vmatprep.subr.mxu0 0.0
    %138 = vmatpush2.msra.mxu0 0.0
    %139 = vmatprep.subr.mxu0 0.0
    %140 = vmatpush2.msra.mxu0 0.0
    %141 = vmatprep.subr.mxu0 0.0
    %142 = vmatpush2.msra.mxu0 0.0
    %143 = vmatprep.subr.mxu0 0.0
    %144 = vmatpush2.msra.mxu0 0.0
    %145 = vmatprep.mubr.f32.mxu0 0.0
    %146 = vmatmul.mubr.f32.gmra.mxu0 %v64
    %v147 = vpop.f32.mrf.mxu0
    %v148 = vadd.f32 0.0, %v147
    %v149 = vpop.f32.mrf.mxu0
    %150 = vdwg.mxu0
    %vm151 = vcmask 523264
    %v153 = vsel %vm151, %v55, 0
    %155 = vmatprep.subr.mxu0 0.0
    %156 = vmatpush1.msra.mxu0 0.0
    %157 = vmatprep.subr.mxu0 0.0
    %158 = vmatpush1.msra.mxu0 0.0
    %159 = vmatprep.subr.mxu0 0.0
    %160 = vmatpush1.msra.mxu0 0.0
    %161 = vmatprep.subr.mxu0 0.0
    %162 = vmatpush1.msra.mxu0 0.0
    %163 = vmatprep.subr.mxu0 0.0
    %164 = vmatpush1.msra.mxu0 0.0
    %165 = vmatprep.subr.mxu0 0.0
    %166 = vmatpush1.msra.mxu0 0.0
    %167 = vmatprep.subr.mxu0 0.0
    %168 = vmatpush1.msra.mxu0 0.0
    %169 = vmatprep.subr.mxu0 0.0
    %170 = vmatpush1.msra.mxu0 0.0
    %171 = vmatprep.subr.mxu0 0.0
    %172 = vmatpush1.msra.mxu0 %v63
    %173 = vmatprep.subr.mxu0 0.0
    %174 = vmatpush1.msra.mxu0 %v62
    %175 = vmatprep.subr.mxu0 0.0
    %176 = vmatpush1.msra.mxu0 %v61
    %177 = vmatprep.subr.mxu0 0.0
    %178 = vmatpush1.msra.mxu0 %v60
    %179 = vmatprep.subr.mxu0 0.0
    %180 = vmatpush1.msra.mxu0 %v59
    %181 = vmatprep.subr.mxu0 0.0
    %182 = vmatpush1.msra.mxu0 %v58
    %183 = vmatprep.subr.mxu0 0.0
    %184 = vmatpush1.msra.mxu0 %v57
    %185 = vmatprep.subr.mxu0 0.0
    %186 = vmatpush1.msra.mxu0 %v56
    %187 = vmatprep.subr.mxu0 0.0
    %188 = vmatpush2.msra.mxu0 0.0
    %189 = vmatprep.subr.mxu0 0.0
    %190 = vmatpush2.msra.mxu0 0.0
    %191 = vmatprep.subr.mxu0 0.0
    %192 = vmatpush2.msra.mxu0 0.0
    %193 = vmatprep.subr.mxu0 0.0
    %194 = vmatpush2.msra.mxu0 0.0
    %195 = vmatprep.subr.mxu0 0.0
    %196 = vmatpush2.msra.mxu0 0.0
    %197 = vmatprep.subr.mxu0 0.0
    %198 = vmatpush2.msra.mxu0 0.0
    %199 = vmatprep.subr.mxu0 0.0
    %200 = vmatpush2.msra.mxu0 0.0
    %201 = vmatprep.subr.mxu0 0.0
    %202 = vmatpush2.msra.mxu0 0.0
    %203 = vmatprep.subr.mxu0 0.0
    %204 = vmatpush2.msra.mxu0 0.0
    %205 = vmatprep.subr.mxu0 0.0
    %206 = vmatpush2.msra.mxu0 0.0
    %207 = vmatprep.subr.mxu0 0.0
    %208 = vmatpush2.msra.mxu0 0.0
    %209 = vmatprep.subr.mxu0 0.0
    %210 = vmatpush2.msra.mxu0 0.0
    %211 = vmatprep.subr.mxu0 0.0
    %212 = vmatpush2.msra.mxu0 0.0
    %213 = vmatprep.subr.mxu0 0.0
    %214 = vmatpush2.msra.mxu0 0.0
    %215 = vmatprep.subr.mxu0 0.0
    %216 = vmatpush2.msra.mxu0 0.0
    %217 = vmatprep.subr.mxu0 0.0
    %218 = vmatpush2.msra.mxu0 0.0
    %219 = vmatprep.mubr.f32.mxu0 0.0
    %220 = vmatmul.mubr.f32.gmra.mxu0 %v153
    %v221 = vpop.f32.mrf.mxu0
    %v222 = vadd.f32 %v148, %v221
    %v223 = vpop.f32.mrf.mxu0
    %224 = vdwg.mxu0
    %v225 = vld [vmem:[%s3] sm:$0x1]
    %v227 = vlaneseq
    %v228 = vshrl.u32 %v227, 7
    %v229 = vsub.s32 0, %v228
    %v230 = vrot.slane %v225, %v229
    %v232 = vadd.f32 %v222, %v230
    %v233 = vmax.f32 %v232, 0.0
    %234 = vst [vmem:[#allocation8] sm:$0xff] %v233
    // Predicated region
    $region30: #{tpu_custom_call.1} parent=1 // pred_check
      _
    $region31: #{tpu_custom_call.1} parent=1 // pred_check_branch
      %236 = sbr.rel (0) target = $region33
    $region32: #{tpu_custom_call.1} parent=1 // pred_region
      %s238 = ssub.s32 128, 128
      %239 = vsyncadd [#allocation4], %s238
      %s241 = sshll.u32 [#allocation8], 4
      %s242 = int_to_ptr.vmem [resolvable:$true] %s241
      %244 = dma.vmem_to_hbm [thread:$0]  %s242, 128, %s4, [#allocation4]
    $region33: #{tpu_custom_call.1} parent=1 // pred_fallthru
      _
    // Predicated region
    $region34: #{tpu_custom_call.1} parent=1 // pred_check
      _
    $region35: #{tpu_custom_call.1} parent=1 // pred_check_branch
      %246 = sbr.rel (0) target = $region37
    $region36: #{tpu_custom_call.1} parent=1 // pred_region
      %247 = dma.done [#allocation4], 128
    $region37: #{tpu_custom_call.1} parent=1 // pred_fallthru
      _
    %248 = vsyncpa [#allocation3], 1
    %249 = vsyncpa [#allocation6], 1
    %250 = vsyncpa [#allocation4], 1

</llo_original>
